<compile_context>
chip_gen: v6e
topology: v6e:2x2x1
jax: 0.10.0
libtpu: 0.0.40
codegen_flags: <defaults>
</compile_context>

<pallas_src>
import jax
import jax.numpy as jnp
from jax import lax
from jax.experimental import pallas as pl
from jax.experimental.pallas import tpu as pltpu


def _round_up(x, m):
    return (x + m - 1) // m * m


def adaptive_gating_kernel(
    x_ref, w1_ref, b1_ref, w2_ref, b2_ref, w3_ref, b3_ref, scale_ref, out_ref
):
    # out_ref columns: [0:2] renormalized top-2 gates, [2:4] expert indices
    # (exact small floats), [4:4+E] softmax scores over all experts.

    # ----- gate_network: Linear -> ReLU -> Dropout(id) -> Linear -> ReLU -> Linear
    h = jnp.dot(x_ref[...], w1_ref[...], preferred_element_type=jnp.float32)
    h = jnp.maximum(h + b1_ref[...], 0.0)
    h = jnp.dot(h.astype(w2_ref.dtype), w2_ref[...],
                preferred_element_type=jnp.float32)
    h = jnp.maximum(h + b2_ref[...], 0.0)
    logits = jnp.dot(h.astype(w3_ref.dtype), w3_ref[...],
                     preferred_element_type=jnp.float32) + b3_ref[...]

    # ----- expert_importance * (1/temperature): one f32 post-matmul multiply
    # (kept in f32 so bf16 rounding cannot flip near-tied top-k indices).
    logits = logits * scale_ref[...]

    tb, E = logits.shape
    col = lax.broadcasted_iota(jnp.int32, (tb, E), 1)

    # ----- softmax over experts (exact reciprocal -> rows sum to 1).
    m1 = jnp.max(logits, axis=-1, keepdims=True)
    e = jnp.exp(logits - m1)                       # row max of e is exactly 1.0
    inv_s = pl.reciprocal(jnp.sum(e, axis=-1, keepdims=True))
    out_ref[:, 4:] = (e * inv_s).astype(out_ref.dtype)

    # ----- top-2 selection driven from e (logits dies here).  The argmax lane
    # has e == 1.0; lowest-index tie-break matches lax.top_k on the probs.
    i1 = jnp.min(jnp.where(e == 1.0, col, E), axis=-1, keepdims=True)
    e2 = jnp.where(col == i1, -1.0, e)
    m2 = jnp.max(e2, axis=-1, keepdims=True)       # = exp(l2 - l1)
    i2 = jnp.min(jnp.where(e2 == m2, col, E), axis=-1, keepdims=True)

    # ----- renormalized gates: v1/(v1+v2) = 1/(1 + exp(l2 - l1)) = 1/(1 + m2).
    g1 = pl.reciprocal(1.0 + m2)
    out_ref[:, 0:1] = g1.astype(out_ref.dtype)
    out_ref[:, 1:2] = (1.0 - g1).astype(out_ref.dtype)
    out_ref[:, 2:3] = i1.astype(out_ref.dtype)
    out_ref[:, 3:4] = i2.astype(out_ref.dtype)


def _pick_tile_and_vmem(B, input_dim, hidden, E, tile_b_max=1024):
    """Footprint-derived batch tile and VMEM limit (safe on v5e/v6e/v7x)."""
    weight_bytes = ((input_dim * hidden + hidden * hidden + hidden * E) * 2  # bf16, x1
                    + (2 * hidden + 2 * E) * 4)                              # biases+scale

    # tile_b: multiple of 8; when B allows, split so the grid has >= 2 steps
    # so both v7x TensorCores get work under "parallel" semantics.
    tile_b = max(8, min(tile_b_max, _round_up(pl.cdiv(B, 2), 8), _round_up(B, 8)))

    def footprint(tb):
        x_bytes = 2 * tb * input_dim * 2          # double-buffered bf16 x tile
        out_bytes = 2 * tb * (E + 4) * 4          # double-buffered f32 merged out
        interm = tb * hidden * 6 + tb * E * 16    # f32 + bf16 h, logits/e/scores
        return weight_bytes + x_bytes + out_bytes + interm

    cap = 48 * 1024 * 1024                        # headroom under v7x's 64 MiB VMEM
    while tile_b > 8 and footprint(tile_b) > cap:
        tile_b = max(8, _round_up(tile_b // 2, 8))

    vmem_limit = int(min(max(2 * footprint(tile_b) + (4 << 20), 24 << 20), 100 << 20))
    return tile_b, vmem_limit


def adaptive_gating_forward(x, params, *, num_experts, load_balancing_weight=0.01,
                            tile_b_max=1024, return_all_scores=False):
    """AdaptiveGating forward pass (context=None, eval mode)."""
    B, input_dim = x.shape
    E = num_experts
    hidden = params["w1"].shape[1]

    tile_b, vmem_limit = _pick_tile_and_vmem(B, input_dim, hidden, E, tile_b_max)
    grid = (pl.cdiv(B, tile_b),)

    bf16 = jnp.bfloat16
    xb = x.astype(bf16)
    w1 = params["w1"].astype(bf16)
    w2 = params["w2"].astype(bf16)
    w3 = params["w3"].astype(bf16)
    b1 = params["b1"].astype(jnp.float32)
    b2 = params["b2"].astype(jnp.float32)
    b3 = params["b3"].astype(jnp.float32)
    # Fold expert_importance and 1/temperature into one constant scale vector.
    scale = (params["expert_importance"]
             * jnp.exp(-params["log_temperature"])).astype(jnp.float32).reshape(1, E)

    batch_tile = lambda i: (i, 0)   # batch-tiled operands
    resident = lambda i: (0, 0)     # weights stay VMEM-resident across the grid
    single = pl.Buffered(1)         # never re-fetched -> single-buffer

    flops = 2 * B * (input_dim * hidden + hidden * hidden + hidden * E)
    bytes_accessed = (
        B * input_dim * 2                                          # x (bf16)
        + (input_dim * hidden + hidden * hidden + hidden * E) * 2  # weights (bf16)
        + (2 * hidden + 2 * E) * 4                                 # biases + scale
        + B * (E + 4) * 4                                          # merged output
    )
    cost = pl.CostEstimate(flops=flops, transcendentals=B * E,
                           bytes_accessed=bytes_accessed)

    merged = pl.pallas_call(
        adaptive_gating_kernel,
        grid=grid,
        in_specs=[
            pl.BlockSpec((tile_b, input_dim), batch_tile),
            pl.BlockSpec((input_dim, hidden), resident, pipeline_mode=single),
            pl.BlockSpec((1, hidden), resident, pipeline_mode=single),
            pl.BlockSpec((hidden, hidden), resident, pipeline_mode=single),
            pl.BlockSpec((1, hidden), resident, pipeline_mode=single),
            pl.BlockSpec((hidden, E), resident, pipeline_mode=single),
            pl.BlockSpec((1, E), resident, pipeline_mode=single),
            pl.BlockSpec((1, E), resident, pipeline_mode=single),
        ],
        out_specs=pl.BlockSpec((tile_b, E + 4), batch_tile),
        out_shape=jax.ShapeDtypeStruct((B, E + 4), jnp.float32),
        compiler_params=pltpu.CompilerParams(
            dimension_semantics=("parallel",),
            vmem_limit_bytes=vmem_limit,
        ),
        cost_estimate=cost,
    )(xb, w1, b1, w2, b2, w3, b3, scale)

    gates = merged[:, 0:2]
    indices = merged[:, 2:4].astype(jnp.int32)   # exact small floats -> exact ints
    scores = merged[:, 4:]

    # Load-balancing loss finished in the wrapper: correct cross-tile reduction
    # over all real rows (no partial-tile bias) that keeps the batch axis parallel.
    # F.kl_div(log(usage+1e-8), uniform, reduction='batchmean') * weight; batchmean /E.
    usage = jnp.mean(scores, axis=0)
    uniform = 1.0 / E
    kl = jnp.sum(uniform * (jnp.log(uniform) - jnp.log(usage + 1e-8)))
    loss = (kl / E) * load_balancing_weight

    out = {"gates": gates, "indices": indices, "load_balancing_loss": loss}
    if return_all_scores:
        out["all_scores"] = scores
    return out


def init_params(key, input_dim, hidden_dim, num_experts, temperature=1.0):
    ks = jax.random.split(key, 6)
    scale = 0.1
    return {
        "w1": scale * jax.random.normal(ks[0], (input_dim, hidden_dim), jnp.float32),
        "b1": scale * jax.random.normal(ks[1], (1, hidden_dim), jnp.float32),
        "w2": scale * jax.random.normal(ks[2], (hidden_dim, hidden_dim), jnp.float32),
        "b2": scale * jax.random.normal(ks[3], (1, hidden_dim), jnp.float32),
        "w3": scale * jax.random.normal(ks[4], (hidden_dim, num_experts), jnp.float32),
        "b3": scale * jax.random.normal(ks[5], (1, num_experts), jnp.float32),
        "expert_importance": jnp.ones((1, num_experts), jnp.float32),
        "log_temperature": jnp.asarray(jnp.log(temperature), jnp.float32),
    }


def _reference(x, params, num_experts, lb_weight=0.01):
    # Mirrors the kernel's bf16 matmul operands (f32 accumulation) so top-k
    # index comparison is apples-to-apples; everything else follows the
    # PyTorch module exactly (importance scale, then /temperature, softmax,
    # top-2 renorm, batchmean KL).
    bf = jnp.bfloat16
    h = jnp.dot(x.astype(bf), params["w1"].astype(bf),
                preferred_element_type=jnp.float32) + params["b1"]
    h = jnp.maximum(h, 0.0)
    h = jnp.dot(h.astype(bf), params["w2"].astype(bf),
                preferred_element_type=jnp.float32) + params["b2"]
    h = jnp.maximum(h, 0.0)
    logits = jnp.dot(h.astype(bf), params["w3"].astype(bf),
                     preferred_element_type=jnp.float32) + params["b3"]
    logits = logits * params["expert_importance"]
    logits = logits / jnp.exp(params["log_temperature"])
    probs = jax.nn.softmax(logits, axis=-1)
    v, i = lax.top_k(probs, 2)
    gates = v / jnp.sum(v, axis=-1, keepdims=True)
    usage = probs.mean(axis=0)
    uni = 1.0 / num_experts
    loss = jnp.sum(uni * (jnp.log(uni) - jnp.log(usage + 1e-8))) / num_experts * lb_weight
    return gates, i.astype(jnp.int32), loss, probs


if __name__ == "__main__":
    batch, input_dim, hidden_dim, num_experts = 8, 32, 32, 8

    key = jax.random.PRNGKey(0)
    pkey, xkey = jax.random.split(key)
    params = init_params(pkey, input_dim, hidden_dim, num_experts, temperature=1.0)
    x = jax.random.normal(xkey, (batch, input_dim), jnp.float32)

    out = adaptive_gating_forward(x, params, num_experts=num_experts,
                                  return_all_scores=True)
    jax.block_until_ready(out)

    g_ref, i_ref, l_ref, p_ref = _reference(x, params, num_experts)
    assert jnp.array_equal(out["indices"], i_ref), "indices mismatch"
    assert jnp.allclose(out["gates"], g_ref, atol=1e-4), "gates mismatch"
    assert jnp.allclose(out["all_scores"], p_ref, atol=1e-3), "scores mismatch"
    assert jnp.allclose(out["load_balancing_loss"], l_ref, rtol=1e-3, atol=2e-5), "loss mismatch"

    print("KERNEL_OK")
</pallas_src>

<mosaic_0001>
module attributes {stable_mosaic.version = 11 : i64} {
  func.func @adaptive_gating_kernel(%arg0: i32, %arg1: memref<8x32xbf16, #tpu.memory_space<vmem>>, %arg2: memref<32x32xbf16, #tpu.memory_space<vmem>>, %arg3: memref<1x32xf32, #tpu.memory_space<vmem>>, %arg4: memref<32x32xbf16, #tpu.memory_space<vmem>>, %arg5: memref<1x32xf32, #tpu.memory_space<vmem>>, %arg6: memref<32x8xbf16, #tpu.memory_space<vmem>>, %arg7: memref<1x8xf32, #tpu.memory_space<vmem>>, %arg8: memref<1x8xf32, #tpu.memory_space<vmem>>, %arg9: memref<8x12xf32, #tpu.memory_space<vmem>>) attributes {dimension_semantics = [#tpu.dimension_semantics<parallel>], iteration_bounds = array<i64: 1>, scalar_prefetch = 0 : i64, scratch_operands = 0 : i64, tpu.core_type = #tpu.core_type<tc>, window_params = [{transform_indices = @transform_0, window_bounds = array<i64: 8, 32>}, {pipeline_mode = #tpu.pipeline_mode<synchronous>, transform_indices = @transform_1, window_bounds = array<i64: 32, 32>}, {pipeline_mode = #tpu.pipeline_mode<synchronous>, transform_indices = @transform_2, window_bounds = array<i64: 1, 32>}, {pipeline_mode = #tpu.pipeline_mode<synchronous>, transform_indices = @transform_3, window_bounds = array<i64: 32, 32>}, {pipeline_mode = #tpu.pipeline_mode<synchronous>, transform_indices = @transform_4, window_bounds = array<i64: 1, 32>}, {pipeline_mode = #tpu.pipeline_mode<synchronous>, transform_indices = @transform_5, window_bounds = array<i64: 32, 8>}, {pipeline_mode = #tpu.pipeline_mode<synchronous>, transform_indices = @transform_6, window_bounds = array<i64: 1, 8>}, {pipeline_mode = #tpu.pipeline_mode<synchronous>, transform_indices = @transform_7, window_bounds = array<i64: 1, 8>}, {transform_indices = @transform_8, window_bounds = array<i64: 8, 12>}]} {
    %c0 = arith.constant 0 : index
    %c0_0 = arith.constant 0 : index
    %0 = vector.load %arg1[%c0, %c0_0] : memref<8x32xbf16, #tpu.memory_space<vmem>>, vector<8x32xbf16>
    %c0_1 = arith.constant 0 : index
    %c0_2 = arith.constant 0 : index
    %1 = vector.load %arg2[%c0_1, %c0_2] : memref<32x32xbf16, #tpu.memory_space<vmem>>, vector<32x32xbf16>
    %cst = arith.constant dense<0.000000e+00> : vector<8x32xf32>
    %2 = tpu.matmul %0, %1, %cst {dimension_numbers = #tpu.dot_dimension_numbers<[1], [0], [0], [1], [0, 0, 1, 1], [], []>} : vector<8x32xbf16>, vector<32x32xbf16>, vector<8x32xf32> -> vector<8x32xf32>
    %c0_3 = arith.constant 0 : index
    %c0_4 = arith.constant 0 : index
    %3 = vector.load %arg3[%c0_3, %c0_4] : memref<1x32xf32, #tpu.memory_space<vmem>>, vector<1x32xf32>
    %4 = vector.broadcast %3 : vector<1x32xf32> to vector<8x32xf32>
    %5 = arith.addf %2, %4 : vector<8x32xf32>
    %cst_5 = arith.constant 0.000000e+00 : f32
    %6 = vector.broadcast %cst_5 : f32 to vector<8x32xf32>
    %7 = arith.maximumf %5, %6 : vector<8x32xf32>
    %8 = arith.truncf %7 : vector<8x32xf32> to vector<8x32xbf16>
    %c0_6 = arith.constant 0 : index
    %c0_7 = arith.constant 0 : index
    %9 = vector.load %arg4[%c0_6, %c0_7] : memref<32x32xbf16, #tpu.memory_space<vmem>>, vector<32x32xbf16>
    %cst_8 = arith.constant dense<0.000000e+00> : vector<8x32xf32>
    %10 = tpu.matmul %8, %9, %cst_8 {dimension_numbers = #tpu.dot_dimension_numbers<[1], [0], [0], [1], [0, 0, 1, 1], [], []>} : vector<8x32xbf16>, vector<32x32xbf16>, vector<8x32xf32> -> vector<8x32xf32>
    %c0_9 = arith.constant 0 : index
    %c0_10 = arith.constant 0 : index
    %11 = vector.load %arg5[%c0_9, %c0_10] : memref<1x32xf32, #tpu.memory_space<vmem>>, vector<1x32xf32>
    %12 = vector.broadcast %11 : vector<1x32xf32> to vector<8x32xf32>
    %13 = arith.addf %10, %12 : vector<8x32xf32>
    %cst_11 = arith.constant 0.000000e+00 : f32
    %14 = vector.broadcast %cst_11 : f32 to vector<8x32xf32>
    %15 = arith.maximumf %13, %14 : vector<8x32xf32>
    %16 = arith.truncf %15 : vector<8x32xf32> to vector<8x32xbf16>
    %c0_12 = arith.constant 0 : index
    %c0_13 = arith.constant 0 : index
    %17 = vector.load %arg6[%c0_12, %c0_13] : memref<32x8xbf16, #tpu.memory_space<vmem>>, vector<32x8xbf16>
    %cst_14 = arith.constant dense<0.000000e+00> : vector<8x8xf32>
    %18 = tpu.matmul %16, %17, %cst_14 {dimension_numbers = #tpu.dot_dimension_numbers<[1], [0], [0], [1], [0, 0, 1, 1], [], []>} : vector<8x32xbf16>, vector<32x8xbf16>, vector<8x8xf32> -> vector<8x8xf32>
    %c0_15 = arith.constant 0 : index
    %c0_16 = arith.constant 0 : index
    %19 = vector.load %arg7[%c0_15, %c0_16] : memref<1x8xf32, #tpu.memory_space<vmem>>, vector<1x8xf32>
    %20 = vector.broadcast %19 : vector<1x8xf32> to vector<8x8xf32>
    %21 = arith.addf %18, %20 : vector<8x8xf32>
    %c0_17 = arith.constant 0 : index
    %c0_18 = arith.constant 0 : index
    %22 = vector.load %arg8[%c0_17, %c0_18] : memref<1x8xf32, #tpu.memory_space<vmem>>, vector<1x8xf32>
    %23 = vector.broadcast %22 : vector<1x8xf32> to vector<8x8xf32>
    %24 = arith.mulf %21, %23 : vector<8x8xf32>
    %25 = tpu.iota {dimensions = array<i32: 1>} : vector<8x8xi32>
    %cst_19 = arith.constant dense<0xFF800000> : vector<8xf32>
    %26 = vector.multi_reduction <maximumf>, %24, %cst_19 [1] : vector<8x8xf32> to vector<8xf32>
    %27 = vector.shape_cast %26 : vector<8xf32> to vector<8x1xf32>
    %28 = vector.broadcast %27 : vector<8x1xf32> to vector<8x8xf32>
    %29 = arith.subf %24, %28 : vector<8x8xf32>
    %30 = math.exp %29 : vector<8x8xf32>
    %cst_20 = arith.constant dense<0.000000e+00> : vector<8xf32>
    %31 = vector.multi_reduction <add>, %30, %cst_20 [1] : vector<8x8xf32> to vector<8xf32>
    %32 = vector.shape_cast %31 : vector<8xf32> to vector<8x1xf32>
    %33 = tpu.reciprocal %32 : vector<8x1xf32> -> vector<8x1xf32>
    %34 = vector.broadcast %33 : vector<8x1xf32> to vector<8x8xf32>
    %35 = arith.mulf %30, %34 : vector<8x8xf32>
    %c0_21 = arith.constant 0 : index
    %c4 = arith.constant 4 : index
    %36 = vector.load %arg9[%c0_21, %c4] : memref<8x12xf32, #tpu.memory_space<vmem>>, vector<8x8xf32>
    tpu.vector_store %arg9[%c0_21, %c4], %35 {strides = array<i32>} : memref<8x12xf32, #tpu.memory_space<vmem>>, vector<8x8xf32>,
    %cst_22 = arith.constant 1.000000e+00 : f32
    %37 = vector.broadcast %cst_22 : f32 to vector<8x8xf32>
    %38 = arith.cmpf oeq, %30, %37 : vector<8x8xf32>
    %c8_i32 = arith.constant 8 : i32
    %39 = vector.broadcast %c8_i32 : i32 to vector<8x8xi32>
    %40 = arith.select %38, %25, %39 : vector<8x8xi1>, vector<8x8xi32>
    %cst_23 = arith.constant dense<2147483647> : vector<8xi32>
    %41 = vector.multi_reduction <minsi>, %40, %cst_23 [1] : vector<8x8xi32> to vector<8xi32>
    %42 = vector.shape_cast %41 : vector<8xi32> to vector<8x1xi32>
    %43 = vector.broadcast %42 : vector<8x1xi32> to vector<8x8xi32>
    %44 = arith.cmpi eq, %25, %43 : vector<8x8xi32>
    %cst_24 = arith.constant -1.000000e+00 : f32
    %45 = vector.broadcast %cst_24 : f32 to vector<8x8xf32>
    %46 = arith.select %44, %45, %30 : vector<8x8xi1>, vector<8x8xf32>
    %cst_25 = arith.constant dense<0xFF800000> : vector<8xf32>
    %47 = vector.multi_reduction <maximumf>, %46, %cst_25 [1] : vector<8x8xf32> to vector<8xf32>
    %48 = vector.shape_cast %47 : vector<8xf32> to vector<8x1xf32>
    %49 = vector.broadcast %48 : vector<8x1xf32> to vector<8x8xf32>
    %50 = arith.cmpf oeq, %46, %49 : vector<8x8xf32>
    %c8_i32_26 = arith.constant 8 : i32
    %51 = vector.broadcast %c8_i32_26 : i32 to vector<8x8xi32>
    %52 = arith.select %50, %25, %51 : vector<8x8xi1>, vector<8x8xi32>
    %cst_27 = arith.constant dense<2147483647> : vector<8xi32>
    %53 = vector.multi_reduction <minsi>, %52, %cst_27 [1] : vector<8x8xi32> to vector<8xi32>
    %54 = vector.shape_cast %53 : vector<8xi32> to vector<8x1xi32>
    %cst_28 = arith.constant 1.000000e+00 : f32
    %55 = vector.broadcast %cst_28 : f32 to vector<8x1xf32>
    %56 = arith.addf %55, %48 : vector<8x1xf32>
    %57 = tpu.reciprocal %56 : vector<8x1xf32> -> vector<8x1xf32>
    %c0_29 = arith.constant 0 : index
    %c0_30 = arith.constant 0 : index
    %58 = vector.load %arg9[%c0_29, %c0_30] : memref<8x12xf32, #tpu.memory_space<vmem>>, vector<8x1xf32>
    tpu.vector_store %arg9[%c0_29, %c0_30], %57 {strides = array<i32>} : memref<8x12xf32, #tpu.memory_space<vmem>>, vector<8x1xf32>,
    %cst_31 = arith.constant 1.000000e+00 : f32
    %59 = vector.broadcast %cst_31 : f32 to vector<8x1xf32>
    %60 = arith.subf %59, %57 : vector<8x1xf32>
    %c0_32 = arith.constant 0 : index
    %c1 = arith.constant 1 : index
    %61 = vector.load %arg9[%c0_32, %c1] : memref<8x12xf32, #tpu.memory_space<vmem>>, vector<8x1xf32>
    tpu.vector_store %arg9[%c0_32, %c1], %60 {strides = array<i32>} : memref<8x12xf32, #tpu.memory_space<vmem>>, vector<8x1xf32>,
    %62 = arith.sitofp %42 : vector<8x1xi32> to vector<8x1xf32>
    %c0_33 = arith.constant 0 : index
    %c2 = arith.constant 2 : index
    %63 = vector.load %arg9[%c0_33, %c2] : memref<8x12xf32, #tpu.memory_space<vmem>>, vector<8x1xf32>
    tpu.vector_store %arg9[%c0_33, %c2], %62 {strides = array<i32>} : memref<8x12xf32, #tpu.memory_space<vmem>>, vector<8x1xf32>,
    %64 = arith.sitofp %54 : vector<8x1xi32> to vector<8x1xf32>
    %c0_34 = arith.constant 0 : index
    %c3 = arith.constant 3 : index
    %65 = vector.load %arg9[%c0_34, %c3] : memref<8x12xf32, #tpu.memory_space<vmem>>, vector<8x1xf32>
    tpu.vector_store %arg9[%c0_34, %c3], %64 {strides = array<i32>} : memref<8x12xf32, #tpu.memory_space<vmem>>, vector<8x1xf32>,
    return
  }
  func.func @transform_0(%arg0: i32) -> (i32, i32) {
    %c0_i32 = arith.constant 0 : i32
    %c0_i32_0 = arith.constant 0 : i32
    return %arg0, %c0_i32 : i32, i32
  }
  func.func @transform_1(%arg0: i32) -> (i32, i32) {
    %c0_i32 = arith.constant 0 : i32
    %c0_i32_0 = arith.constant 0 : i32
    %c0_i32_1 = arith.constant 0 : i32
    return %c0_i32, %c0_i32_0 : i32, i32
  }
  func.func @transform_2(%arg0: i32) -> (i32, i32) {
    %c0_i32 = arith.constant 0 : i32
    %c0_i32_0 = arith.constant 0 : i32
    %c0_i32_1 = arith.constant 0 : i32
    return %c0_i32, %c0_i32_0 : i32, i32
  }
  func.func @transform_3(%arg0: i32) -> (i32, i32) {
    %c0_i32 = arith.constant 0 : i32
    %c0_i32_0 = arith.constant 0 : i32
    %c0_i32_1 = arith.constant 0 : i32
    return %c0_i32, %c0_i32_0 : i32, i32
  }
  func.func @transform_4(%arg0: i32) -> (i32, i32) {
    %c0_i32 = arith.constant 0 : i32
    %c0_i32_0 = arith.constant 0 : i32
    %c0_i32_1 = arith.constant 0 : i32
    return %c0_i32, %c0_i32_0 : i32, i32
  }
  func.func @transform_5(%arg0: i32) -> (i32, i32) {
    %c0_i32 = arith.constant 0 : i32
    %c0_i32_0 = arith.constant 0 : i32
    %c0_i32_1 = arith.constant 0 : i32
    return %c0_i32, %c0_i32_0 : i32, i32
  }
  func.func @transform_6(%arg0: i32) -> (i32, i32) {
    %c0_i32 = arith.constant 0 : i32
    %c0_i32_0 = arith.constant 0 : i32
    %c0_i32_1 = arith.constant 0 : i32
    return %c0_i32, %c0_i32_0 : i32, i32
  }
  func.func @transform_7(%arg0: i32) -> (i32, i32) {
    %c0_i32 = arith.constant 0 : i32
    %c0_i32_0 = arith.constant 0 : i32
    %c0_i32_1 = arith.constant 0 : i32
    return %c0_i32, %c0_i32_0 : i32, i32
  }
  func.func @transform_8(%arg0: i32) -> (i32, i32) {
    %c0_i32 = arith.constant 0 : i32
    %c0_i32_0 = arith.constant 0 : i32
    return %arg0, %c0_i32 : i32, i32
  }
}

</mosaic_0001>

<llo_original>
// kernel: tpu_custom_call.1
$region0: #{tpu_custom_call.1}
  #allocation0 [shape = 'u32[]', space=smem, size = 0x4, offset = 0x4, fixed_abs, tag = 'smem constant byte address 0x4 - core index']
  #allocation1 [shape = 'u32[144,128]{1,0:T(1,128)}', space=vmem, size = 0x12000, scoped, tag = 'internal scratch']
  %s0 = inlined_call_operand.vmem [shape: bf16[8,32], index: 0, kind: input, shape index: {}]
  %s1 = inlined_call_operand.vmem [shape: bf16[32,32], index: 1, kind: input, shape index: {}]
  %s2 = inlined_call_operand.vmem [shape: f32[1,32], index: 2, kind: input, shape index: {}]
  %s3 = inlined_call_operand.hbm [shape: bf16[32,32], index: 3, kind: input, shape index: {}]
  %s4 = inlined_call_operand.vmem [shape: f32[1,32], index: 4, kind: input, shape index: {}]
  %s5 = inlined_call_operand.vmem [shape: bf16[32,8], index: 5, kind: input, shape index: {}]
  %s6 = inlined_call_operand.vmem [shape: f32[1,8], index: 6, kind: input, shape index: {}]
  %s7 = inlined_call_operand.vmem [shape: f32[1,8], index: 7, kind: input, shape index: {}]
  %s8 = inlined_call_operand.hbm [shape: f32[8,12], index: 8, kind: output, shape index: {}]
  %s9 = sld [smem:[#allocation0]]
  $region46: #{tpu_custom_call.1} parent=0
    _
  %s11 = ssub.s32 1, %s9
  %s12 = scalar_select 0, %s11, %s9
  $region1: #{tpu_custom_call.1} parent=0
    #allocation2 [shape = 'u8[8192]{0}', space=vmem, size = 0x2000, scoped, tag = 'input window, operand 3, single buffered']
    #allocation3 [shape = 's32[1]{0}', space=sflag, size = 0x4, scoped, tag = 'scoped memory for tpu_custom_call.1']
    #allocation4 [shape = 's32[1]{0}', space=sflag, size = 0x4, scoped, tag = 'scoped memory for tpu_custom_call.1']
    #allocation5 [shape = 'u8[4096]{0}', space=vmem, size = 0x1000, scoped, tag = 'output window, operand 0, single buffered']
    %13 = vsyncpa [#allocation3], 0
    %14 = vsyncpa [#allocation4], 0
    // Predicated region
    $region2: #{tpu_custom_call.1} parent=1 // pred_check
      _
    $region3: #{tpu_custom_call.1} parent=1 // pred_check_branch
      %16 = sbr.rel (0) target = $region5
    $region4: #{tpu_custom_call.1} parent=1 // pred_region
      _
    $region5: #{tpu_custom_call.1} parent=1 // pred_fallthru
      _
    // Predicated region
    $region6: #{tpu_custom_call.1} parent=1 // pred_check
      _
    $region7: #{tpu_custom_call.1} parent=1 // pred_check_branch
      %18 = sbr.rel (0) target = $region9
    $region8: #{tpu_custom_call.1} parent=1 // pred_region
      _
    $region9: #{tpu_custom_call.1} parent=1 // pred_fallthru
      _
    // Predicated region
    $region10: #{tpu_custom_call.1} parent=1 // pred_check
      _
    $region11: #{tpu_custom_call.1} parent=1 // pred_check_branch
      %20 = sbr.rel (0) target = $region13
    $region12: #{tpu_custom_call.1} parent=1 // pred_region
      _
    $region13: #{tpu_custom_call.1} parent=1 // pred_fallthru
      _
    // Predicated region
    $region14: #{tpu_custom_call.1} parent=1 // pred_check
      _
    $region15: #{tpu_custom_call.1} parent=1 // pred_check_branch
      %22 = sbr.rel (0) target = $region17
    $region16: #{tpu_custom_call.1} parent=1 // pred_region
      %s24 = ssub.s32 256, 256
      %25 = vsyncadd [#allocation3], %s24
      %s26 = sshll.u32 [#allocation2], 4
      %s27 = int_to_ptr.vmem [resolvable:$true] %s26
      %32 = dma.hbm_to_vmem [thread:$0]  %s3, 256, %s27, [#allocation3], 64, 64, 4
    $region17: #{tpu_custom_call.1} parent=1 // pred_fallthru
      _
    // Predicated region
    $region18: #{tpu_custom_call.1} parent=1 // pred_check
      _
    $region19: #{tpu_custom_call.1} parent=1 // pred_check_branch
      %34 = sbr.rel (0) target = $region21
    $region20: #{tpu_custom_call.1} parent=1 // pred_region
      _
    $region21: #{tpu_custom_call.1} parent=1 // pred_fallthru
      _
    // Predicated region
    $region22: #{tpu_custom_call.1} parent=1 // pred_check
      _
    $region23: #{tpu_custom_call.1} parent=1 // pred_check_branch
      %36 = sbr.rel (0) target = $region25
    $region24: #{tpu_custom_call.1} parent=1 // pred_region
      _
    $region25: #{tpu_custom_call.1} parent=1 // pred_fallthru
      _
    // Predicated region
    $region26: #{tpu_custom_call.1} parent=1 // pred_check
      _
    $region27: #{tpu_custom_call.1} parent=1 // pred_check_branch
      %38 = sbr.rel (0) target = $region29
    $region28: #{tpu_custom_call.1} parent=1 // pred_region
      _
    $region29: #{tpu_custom_call.1} parent=1 // pred_fallthru
      _
    // Predicated region
    $region30: #{tpu_custom_call.1} parent=1 // pred_check
      _
    $region31: #{tpu_custom_call.1} parent=1 // pred_check_branch
      %40 = sbr.rel (0) target = $region33
    $region32: #{tpu_custom_call.1} parent=1 // pred_region
      _
    $region33: #{tpu_custom_call.1} parent=1 // pred_fallthru
      _
    // Predicated region
    $region34: #{tpu_custom_call.1} parent=1 // pred_check
      _
    $region35: #{tpu_custom_call.1} parent=1 // pred_check_branch
      %42 = sbr.rel (0) target = $region37
    $region36: #{tpu_custom_call.1} parent=1 // pred_region
      %43 = dma.done [#allocation3], 256
    $region37: #{tpu_custom_call.1} parent=1 // pred_fallthru
      _
    %v45 = vld [vmem:[%s0] sm:$0xf]
    %v46 = vld [vmem:[%s1] sm:$0xf]
    %v47 = vld [vmem:[%s1 + $0x4] sm:$0xf]
    %v48 = vld [vmem:[%s1 + $0x8] sm:$0xf]
    %v49 = vld [vmem:[%s1 + $0xc] sm:$0xf]
    %v50 = vld [vmem:[%s2] sm:$0x1]
    %v52 = vlaneseq
    %v53 = vshrl.u32 %v52, 7
    %v54 = vsub.s32 0, %v53
    %v55 = vrot.slane %v50, %v54
    %v61 = vunpack.c.l.b16 %v46
    %v62 = vunpack.c.l.b16 %v47
    %v63 = vunpack.c.l.b16 %v48
    %v64 = vunpack.c.l.b16 %v49
    %v65 = vpack.c.b16 %v62, %v61
    %v66 = vpack.c.b16 %v64, %v63
    %vm69 = vcmask 261120
    %v71 = vsel %vm69, %v45, 0
    %73 = vmatprep.subr.bf16.mxu0 0
    %74 = vmatpush1.bf16.msra.mxu0 0
    %75 = vmatprep.subr.bf16.mxu0 0
    %76 = vmatpush1.bf16.msra.mxu0 0
    %77 = vmatprep.subr.bf16.mxu0 0
    %78 = vmatpush1.bf16.msra.mxu0 0
    %79 = vmatprep.subr.bf16.mxu0 0
    %80 = vmatpush1.bf16.msra.mxu0 0
    %81 = vmatprep.subr.bf16.mxu0 0
    %82 = vmatpush1.bf16.msra.mxu0 0
    %83 = vmatprep.subr.bf16.mxu0 0
    %84 = vmatpush1.bf16.msra.mxu0 0
    %85 = vmatprep.subr.bf16.mxu0 0
    %86 = vmatpush1.bf16.msra.mxu0 %v66
    %87 = vmatprep.subr.bf16.mxu0 0
    %88 = vmatpush1.bf16.msra.mxu0 %v65
    %89 = vmatprep.subr.bf16.mxu0 0
    %90 = vmatpush2.bf16.msra.mxu0 0
    %91 = vmatprep.subr.bf16.mxu0 0
    %92 = vmatpush2.bf16.msra.mxu0 0
    %93 = vmatprep.subr.bf16.mxu0 0
    %94 = vmatpush2.bf16.msra.mxu0 0
    %95 = vmatprep.subr.bf16.mxu0 0
    %96 = vmatpush2.bf16.msra.mxu0 0
    %97 = vmatprep.subr.bf16.mxu0 0
    %98 = vmatpush2.bf16.msra.mxu0 0
    %99 = vmatprep.subr.bf16.mxu0 0
    %100 = vmatpush2.bf16.msra.mxu0 0
    %101 = vmatprep.subr.bf16.mxu0 0
    %102 = vmatpush2.bf16.msra.mxu0 0
    %103 = vmatprep.subr.bf16.mxu0 0
    %104 = vmatpush2.bf16.msra.mxu0 0
    %105 = vmatprep.mubr.bf16.mxu0 0
    %106 = vmatmul.mubr.bf16.gmra.mxu0 %v71
    %v107 = vpop.f32.mrf.mxu0
    %v108 = vadd.f32 %v55, %v107
    %v109 = vpop.f32.mrf.mxu0
    %v110 = vpop.f32.mrf.mxu0
    %v111 = vpop.f32.mrf.mxu0
    %112 = vdwg.mxu0
    %v113 = vmax.f32 %v108, 0.0
    %v114 = vpack.c.bf16 %v113, %v113
    %v115 = vld [vmem:[#allocation2] sm:$0xf]
    %v116 = vld [vmem:[#allocation2 + $0x4] sm:$0xf]
    %v117 = vld [vmem:[#allocation2 + $0x8] sm:$0xf]
    %v118 = vld [vmem:[#allocation2 + $0xc] sm:$0xf]
    %v119 = vld [vmem:[%s4] sm:$0x1]
    %v121 = vlaneseq
    %v122 = vshrl.u32 %v121, 7
    %v123 = vsub.s32 0, %v122
    %v124 = vrot.slane %v119, %v123
    %v130 = vunpack.c.l.b16 %v115
    %v131 = vunpack.c.l.b16 %v116
    %v132 = vunpack.c.l.b16 %v117
    %v133 = vunpack.c.l.b16 %v118
    %v134 = vpack.c.b16 %v131, %v130
    %v135 = vpack.c.b16 %v133, %v132
    %v139 = vsel %vm69, %v114, 0
    %141 = vmatprep.subr.bf16.mxu0 0
    %142 = vmatpush1.bf16.msra.mxu0 0
    %143 = vmatprep.subr.bf16.mxu0 0
    %144 = vmatpush1.bf16.msra.mxu0 0
    %145 = vmatprep.subr.bf16.mxu0 0
    %146 = vmatpush1.bf16.msra.mxu0 0
    %147 = vmatprep.subr.bf16.mxu0 0
    %148 = vmatpush1.bf16.msra.mxu0 0
    %149 = vmatprep.subr.bf16.mxu0 0
    %150 = vmatpush1.bf16.msra.mxu0 0
    %151 = vmatprep.subr.bf16.mxu0 0
    %152 = vmatpush1.bf16.msra.mxu0 0
    %153 = vmatprep.subr.bf16.mxu0 0
    %154 = vmatpush1.bf16.msra.mxu0 %v135
    %155 = vmatprep.subr.bf16.mxu0 0
    %156 = vmatpush1.bf16.msra.mxu0 %v134
    %157 = vmatprep.subr.bf16.mxu0 0
    %158 = vmatpush2.bf16.msra.mxu0 0
    %159 = vmatprep.subr.bf16.mxu0 0
    %160 = vmatpush2.bf16.msra.mxu0 0
    %161 = vmatprep.subr.bf16.mxu0 0
    %162 = vmatpush2.bf16.msra.mxu0 0
    %163 = vmatprep.subr.bf16.mxu0 0
    %164 = vmatpush2.bf16.msra.mxu0 0
    %165 = vmatprep.subr.bf16.mxu0 0
    %166 = vmatpush2.bf16.msra.mxu0 0
    %167 = vmatprep.subr.bf16.mxu0 0
    %168 = vmatpush2.bf16.msra.mxu0 0
    %169 = vmatprep.subr.bf16.mxu0 0
    %170 = vmatpush2.bf16.msra.mxu0 0
    %171 = vmatprep.subr.bf16.mxu0 0
    %172 = vmatpush2.bf16.msra.mxu0 0
    %173 = vmatprep.mubr.bf16.mxu0 0
    %174 = vmatmul.mubr.bf16.gmra.mxu0 %v139
    %v175 = vpop.f32.mrf.mxu0
    %v176 = vadd.f32 %v124, %v175
    %v177 = vpop.f32.mrf.mxu0
    %v178 = vpop.f32.mrf.mxu0
    %v179 = vpop.f32.mrf.mxu0
    %180 = vdwg.mxu0
    %v181 = vmax.f32 %v176, 0.0
    %v182 = vpack.c.bf16 %v181, %v181
    %v183 = vld [vmem:[%s5] sm:$0xf]
    %v184 = vld [vmem:[%s5 + $0x4] sm:$0xf]
    %v185 = vld [vmem:[%s5 + $0x8] sm:$0xf]
    %v186 = vld [vmem:[%s5 + $0xc] sm:$0xf]
    %v187 = vld [vmem:[%s6] sm:$0x1]
    %v189 = vlaneseq
    %v190 = vshrl.u32 %v189, 7
    %v191 = vsub.s32 0, %v190
    %v192 = vrot.slane %v187, %v191
    %v198 = vunpack.c.l.b16 %v183
    %v199 = vunpack.c.l.b16 %v184
    %v200 = vunpack.c.l.b16 %v185
    %v201 = vunpack.c.l.b16 %v186
    %v202 = vpack.c.b16 %v199, %v198
    %v203 = vpack.c.b16 %v201, %v200
    %v207 = vsel %vm69, %v182, 0
    %209 = vmatprep.subr.bf16.mxu0 0
    %210 = vmatpush1.bf16.msra.mxu0 0
    %211 = vmatprep.subr.bf16.mxu0 0
    %212 = vmatpush1.bf16.msra.mxu0 0
    %213 = vmatprep.subr.bf16.mxu0 0
    %214 = vmatpush1.bf16.msra.mxu0 0
    %215 = vmatprep.subr.bf16.mxu0 0
    %216 = vmatpush1.bf16.msra.mxu0 0
    %217 = vmatprep.subr.bf16.mxu0 0
    %218 = vmatpush1.bf16.msra.mxu0 0
    %219 = vmatprep.subr.bf16.mxu0 0
    %220 = vmatpush1.bf16.msra.mxu0 0
    %221 = vmatprep.subr.bf16.mxu0 0
    %222 = vmatpush1.bf16.msra.mxu0 %v203
    %223 = vmatprep.subr.bf16.mxu0 0
    %224 = vmatpush1.bf16.msra.mxu0 %v202
    %225 = vmatprep.subr.bf16.mxu0 0
    %226 = vmatpush2.bf16.msra.mxu0 0
    %227 = vmatprep.subr.bf16.mxu0 0
    %228 = vmatpush2.bf16.msra.mxu0 0
    %229 = vmatprep.subr.bf16.mxu0 0
    %230 = vmatpush2.bf16.msra.mxu0 0
    %231 = vmatprep.subr.bf16.mxu0 0
    %232 = vmatpush2.bf16.msra.mxu0 0
    %233 = vmatprep.subr.bf16.mxu0 0
    %234 = vmatpush2.bf16.msra.mxu0 0
    %235 = vmatprep.subr.bf16.mxu0 0
    %236 = vmatpush2.bf16.msra.mxu0 0
    %237 = vmatprep.subr.bf16.mxu0 0
    %238 = vmatpush2.bf16.msra.mxu0 0
    %239 = vmatprep.subr.bf16.mxu0 0
    %240 = vmatpush2.bf16.msra.mxu0 0
    %241 = vmatprep.mubr.bf16.mxu0 0
    %242 = vmatmul.mubr.bf16.gmra.mxu0 %v207
    %v243 = vpop.f32.mrf.mxu0
    %v244 = vadd.f32 %v192, %v243
    %v245 = vpop.f32.mrf.mxu0
    %v246 = vpop.f32.mrf.mxu0
    %v247 = vpop.f32.mrf.mxu0
    %248 = vdwg.mxu0
    %v249 = vld [vmem:[%s7] sm:$0x1]
    %v251 = vlaneseq
    %v252 = vshrl.u32 %v251, 7
    %v253 = vsub.s32 0, %v252
    %v254 = vrot.slane %v249, %v253
    %v256 = vmul.f32 %v244, %v254
    %v257 = vlaneseq
    %v258 = vand.u32 %v257, 127
    %vm259 = vcmask 64512
    %v260 = vsel %vm259, %v256, -inf
    %261 = vmax.xlane.f32.xlu0 %v260
    %v262 = vpop.xlane.xlu0 %261
    %v263 = vsub.f32 %v256, %v262
    %v264 = vmul.f32 %v263, 1.442695
    %v265 = vpow.pop %v264
    %v266 = vsel %vm259, %v265, 0.0
    %267 = vadd.xlane.f32.xlu0 %v266
    %v268 = vpop.xlane.xlu0 %267
    %v269 = vrcp.pop %v268
    %v270 = vmul.f32 %v265, %v269
    %272 = vrot.lane.b32.xlu0 %v270, 4
    %v273 = vpop.permute.xlu0 %272
    %vm275 = vcmask 97312
    %276 = vst.msk [vmem:[#allocation5] sm:$0xff] %vm275, %v273
    %vm277 = vcmp.eq.f32.partialorder %v265, 1.0
    %v278 = vsel %vm277, %v258, 8
    %v279 = vsel %vm259, %v278, 2147483647
    %v280 = vand.u32 %v279, 65535
    %v281 = vshra.s32 %v279, 16
    %v282 = vcvt.s32.f32 %v280
    %v283 = vcvt.s32.f32 %v281
    %284 = vmin.xlane.f32.xlu0 %v283
    %v285 = vpop.xlane.xlu0 %284
    %vm286 = vcmp.eq.f32.partialorder %v283, %v285
    %v287 = vsel %vm286, %v282, inf
    %288 = vmin.xlane.f32.xlu0 %v287
    %v289 = vpop.xlane.xlu0 %288
    %v290 = vcvt.f32.s32 %v289
    %v291 = vcvt.f32.s32 %v285
    %v292 = vshll.u32 %v291, 16
    %v293 = vadd.s32 %v292, %v290
    %vm294 = vcmp.eq.s32.totalorder %v258, %v293
    %v295 = vsel %vm294, -1.0, %v265
    %v296 = vsel %vm259, %v295, -inf
    %297 = vmax.xlane.f32.xlu0 %v296
    %v298 = vpop.xlane.xlu0 %297
    %vm299 = vcmp.eq.f32.partialorder %v295, %v298
    %v300 = vsel %vm299, %v258, 8
    %v301 = vsel %vm259, %v300, 2147483647
    %v302 = vand.u32 %v301, 65535
    %v303 = vshra.s32 %v301, 16
    %v304 = vcvt.s32.f32 %v302
    %v305 = vcvt.s32.f32 %v303
    %306 = vmin.xlane.f32.xlu0 %v305
    %v307 = vpop.xlane.xlu0 %306
    %vm308 = vcmp.eq.f32.partialorder %v305, %v307
    %v309 = vsel %vm308, %v304, inf
    %310 = vmin.xlane.f32.xlu0 %v309
    %v311 = vpop.xlane.xlu0 %310
    %v312 = vcvt.f32.s32 %v311
    %v313 = vcvt.f32.s32 %v307
    %v314 = vshll.u32 %v313, 16
    %v315 = vadd.s32 %v314, %v312
    %v316 = vadd.f32 %v298, 1.0
    %v317 = vrcp.pop %v316
    %vm318 = vcmask 7168
    %319 = vst.msk [vmem:[#allocation5] sm:$0xff] %vm318, %v317
    %v320 = vsub.f32 1.0, %v317
    %vm321 = vcmask 15368
    %322 = vst.msk [vmem:[#allocation5] sm:$0xff] %vm321, %v320
    %v323 = vcvt.s32.f32 %v293
    %vm324 = vcmask 23568
    %325 = vst.msk [vmem:[#allocation5] sm:$0xff] %vm324, %v323
    %v326 = vcvt.s32.f32 %v315
    %vm327 = vcmask 31768
    %328 = vst.msk [vmem:[#allocation5] sm:$0xff] %vm327, %v326
    // Predicated region
    $region38: #{tpu_custom_call.1} parent=1 // pred_check
      _
    $region39: #{tpu_custom_call.1} parent=1 // pred_check_branch
      %330 = sbr.rel (0) target = $region41
    $region40: #{tpu_custom_call.1} parent=1 // pred_region
      %s332 = ssub.s32 128, 128
      %333 = vsyncadd [#allocation4], %s332
      %s335 = sshll.u32 [#allocation5], 4
      %s336 = int_to_ptr.vmem [resolvable:$true] %s335
      %338 = dma.vmem_to_hbm [thread:$0]  %s336, 128, %s8, [#allocation4]
    $region41: #{tpu_custom_call.1} parent=1 // pred_fallthru
      _
    // Predicated region
    $region42: #{tpu_custom_call.1} parent=1 // pred_check
      _
    $region43: #{tpu_custom_call.1} parent=1 // pred_check_branch
      %340 = sbr.rel (0) target = $region45
    $region44: #{tpu_custom_call.1} parent=1 // pred_region
      %341 = dma.done [#allocation4], 128
    $region45: #{tpu_custom_call.1} parent=1 // pred_fallthru
      _
    %342 = vsyncpa [#allocation3], 1
    %343 = vsyncpa [#allocation4], 1

</llo_original>
